<compile_context>
chip_gen: v7x
topology: tpu7x:2x2x1
jax: 0.10.0
libtpu: 0.0.40
codegen_flags: <defaults>
</compile_context>

<pallas_src>
import functools

import jax
import jax.numpy as jnp
import numpy as np
from jax.experimental import pallas as pl
from jax.experimental.pallas import tpu as pltpu


_SUBLANE = {4: 8, 2: 16, 1: 32}          # packed rows per vreg, by itemsize
_TARGET_BLOCK_BYTES = 2 << 20            # ~2 MiB per buffer -> <= 8 MiB pipelined
_MIN_ROW_BLOCKS = 8                      # keep the "parallel" grid fed
_LANE = 128


# --------------------------------------------------------------------------- #
# Kernels
# --------------------------------------------------------------------------- #
def _flat_kernel(x_ref, o_ref, *, d, half, block_rows, aligned):
    """Lane-dense path: the array is viewed as a flat (R, 128) slab.

    aligned == (128 % d == 0): the feature index of an element depends only on
    its lane, so every mask below is a trace-time constant (no per-block index
    math survives into the loop body). Otherwise recover the feature index
    from the global flat element index.
    """
    x = x_ref[...]
    col = jax.lax.broadcasted_iota(jnp.int32, x.shape, 1)
    if aligned:
        f = col % d                                  # constant across rows/grid
    else:
        i = pl.program_id(0)
        row = jax.lax.broadcasted_iota(jnp.int32, x.shape, 0)
        f = ((i * block_rows + row) * _LANE + col) % d
    if d % 2 == 0:
        # flat index parity == lane parity (128 and d are even) -> constant mask
        neg = (col % 2) == 0
    else:
        neg = (f % 2) == 0
    xs = jnp.where(neg, -x, x)                       # alternating signs, -1 first
    # sin/relu elements are interleaved inside each vreg on this path, so the
    # final select is unavoidable here.
    o_ref[...] = jnp.where(f < half, jnp.sin(xs), jnp.maximum(xs, 0))


def _tiled_kernel(x_ref, o_ref, *, half, block_cols):
    """D-tiled path (D % 128 == 0): blocks carry a global column offset; sin is
    only computed on blocks that actually need it."""
    col0 = pl.program_id(1) * block_cols
    x = x_ref[...]
    lcol = jax.lax.broadcasted_iota(jnp.int32, x.shape, 1)
    # col0 = j * block_cols with block_cols even -> global parity == local
    # parity -> the sign mask is a compile-time constant.
    xs = jnp.where((lcol % 2) == 0, -x, x)

    @pl.when(col0 + block_cols <= half)              # block fully in sin half
    def _():
        o_ref[...] = jnp.sin(xs)

    @pl.when(col0 >= half)                           # block fully in relu half
    def _():
        o_ref[...] = jnp.maximum(xs, 0)

    @pl.when(jnp.logical_and(col0 < half, col0 + block_cols > half))
    def _():                                         # block straddling the split
        col = col0 + lcol
        o_ref[...] = jnp.where(col < half, jnp.sin(xs), jnp.maximum(xs, 0))


def _rowblock_kernel(x_ref, o_ref, *, half):
    """Fallback: full-width (tm, D) blocks (lane-sparse stores for small,
    non-128-multiple D, but no extra HBM copies and no padding). Here the lane
    index IS the feature index, so the masks are constants."""
    x = x_ref[...]
    col = jax.lax.broadcasted_iota(jnp.int32, x.shape, 1)
    xs = jnp.where((col % 2) == 0, -x, x)
    o_ref[...] = jnp.where(col < half, jnp.sin(xs), jnp.maximum(xs, 0))


# --------------------------------------------------------------------------- #
# Block-size selection
# --------------------------------------------------------------------------- #
def _pick_rows(rows, row_bytes, sub):
    """Rows per block: big enough to amortize the ~0.35us per-grid-step cost,
    small enough that double-buffered in+out tiles fit scoped VMEM on every
    chip generation, and leaving several blocks for the parallel grid."""
    if rows <= sub:
        return rows                                  # single full-extent block
    tm = max(sub, _TARGET_BLOCK_BYTES // max(row_bytes, 1))
    if rows >= sub * _MIN_ROW_BLOCKS:
        tm = min(tm, pl.cdiv(rows, _MIN_ROW_BLOCKS))
    tm = min(tm, rows)
    return max(sub, (tm // sub) * sub)


def _pick_cols(d, half):
    """Column tile for the D-tiled path: prefer a tile that also divides the
    sin/relu split point so no block needs the per-element straddle select."""
    td = next((c for c in (1024, 512, 256, 128)
               if d % c == 0 and half % c == 0), None)
    if td is None:
        td = next(c for c in (1024, 512, 384, 256, 128) if d % c == 0)
    return td


# --------------------------------------------------------------------------- #
# Wrapper
# --------------------------------------------------------------------------- #
@jax.jit
def hh_sinlu(x):
    """Apply hhSinLU along the last axis of `x` using a Pallas TPU kernel."""
    orig_shape = x.shape
    if x.size == 0:
        return x
    D = int(orig_shape[-1])
    half = -(-D // 2)                                  # ceil(D/2) == torch.chunk split
    itemsize = jnp.dtype(x.dtype).itemsize
    sub = _SUBLANE.get(itemsize, 8)
    M = int(np.prod(orig_shape[:-1])) if len(orig_shape) > 1 else 1
    N = M * D

    if D % _LANE == 0:
        # Large, lane-aligned feature dim: tile both rows and columns so big D
        # never blows VMEM (v7x has only 64 MiB physical / 32 MiB scoped).
        td = _pick_cols(D, half)
        x2d = x.reshape(M, D)
        tm = _pick_rows(M, td * itemsize, sub)
        out = pl.pallas_call(
            functools.partial(_tiled_kernel, half=half, block_cols=td),
            out_shape=jax.ShapeDtypeStruct((M, D), x.dtype),
            grid=(pl.cdiv(M, tm), D // td),
            in_specs=[pl.BlockSpec((tm, td), lambda i, j: (i, j))],
            out_specs=pl.BlockSpec((tm, td), lambda i, j: (i, j)),
            compiler_params=pltpu.CompilerParams(
                dimension_semantics=("parallel", "parallel")),
        )(x2d)
        return out.reshape(orig_shape)

    if N % _LANE == 0:
        # Small / non-aligned D (e.g. D=16): present a lane-dense layout so
        # every store is a full-width vst instead of a masked partial store.
        R = N // _LANE
        xf = x.reshape(R, _LANE)
        tm = _pick_rows(R, _LANE * itemsize, sub)
        out = pl.pallas_call(
            functools.partial(_flat_kernel, d=D, half=half, block_rows=tm,
                              aligned=(_LANE % D == 0)),
            out_shape=jax.ShapeDtypeStruct((R, _LANE), x.dtype),
            grid=(pl.cdiv(R, tm),),
            in_specs=[pl.BlockSpec((tm, _LANE), lambda i: (i, 0))],
            out_specs=pl.BlockSpec((tm, _LANE), lambda i: (i, 0)),
            compiler_params=pltpu.CompilerParams(
                dimension_semantics=("parallel",)),
        )(xf)
        return out.reshape(orig_shape)

    # Fallback: full-width row blocks, ragged last block handled by Pallas
    # (no wrapper pad / slice copies).
    x2d = x.reshape(M, D)
    tm = _pick_rows(M, D * itemsize, sub)
    out = pl.pallas_call(
        functools.partial(_rowblock_kernel, half=half),
        out_shape=jax.ShapeDtypeStruct((M, D), x.dtype),
        grid=(pl.cdiv(M, tm),),
        in_specs=[pl.BlockSpec((tm, D), lambda i: (i, 0))],
        out_specs=pl.BlockSpec((tm, D), lambda i: (i, 0)),
        compiler_params=pltpu.CompilerParams(
            dimension_semantics=("parallel",)),
    )(x2d)
    return out.reshape(orig_shape)


def hh_sinlu_ref(x):
    """Pure-JAX reference mirroring the PyTorch module."""
    D = x.shape[-1]
    base = jnp.array([-1.0, 1.0], dtype=x.dtype)
    signs = jnp.tile(base, int(D / 2 + 1))[:D]
    xs = x * signs
    half = -(-D // 2)
    x1, x2 = xs[..., :half], xs[..., half:]
    return jnp.concatenate([jnp.sin(x1), jnp.maximum(x2, 0)], axis=-1)


if __name__ == "__main__":
    key = jax.random.PRNGKey(0)

    # NCHW-style input; the activation acts along the last (W) dim, exactly like
    # the PyTorch module (which always acts on dim=-1).
    x = jax.random.normal(key, (2, 4, 16, 16), dtype=jnp.float32)
    out = jax.block_until_ready(hh_sinlu(x))
    np.testing.assert_allclose(np.asarray(out), np.asarray(hh_sinlu_ref(x)),
                               rtol=1e-6, atol=1e-6)

    # Exercise the other code paths on tiny shapes:
    #   D-tiled with clean split (D=256), D-tiled with a straddle block (D=384),
    #   flat aligned path with a ragged last row block (D=16), flat general path
    #   (D=48 does not divide 128), row-block fallback with ragged rows, and an
    #   odd feature dim.
    for idx, shape in enumerate([(8, 256), (2, 3, 384), (9, 8, 16),
                                 (128, 48), (300, 16), (4, 7)]):
        xi = jax.random.normal(jax.random.fold_in(key, idx), shape,
                               dtype=jnp.float32)
        oi = jax.block_until_ready(hh_sinlu(xi))
        np.testing.assert_allclose(np.asarray(oi), np.asarray(hh_sinlu_ref(xi)),
                                   rtol=1e-6, atol=1e-6)

    print("KERNEL_OK")
</pallas_src>

<mosaic_0001>
module attributes {stable_mosaic.version = 11 : i64} {
  func.func @_flat_kernel(%arg0: i32, %arg1: memref<16x128xf32, #tpu.memory_space<vmem>>, %arg2: memref<16x128xf32, #tpu.memory_space<vmem>>) attributes {dimension_semantics = [#tpu.dimension_semantics<parallel>], iteration_bounds = array<i64: 1>, scalar_prefetch = 0 : i64, scratch_operands = 0 : i64, tpu.core_type = #tpu.core_type<tc>, window_params = [{transform_indices = @transform_0, window_bounds = array<i64: 16, 128>}, {transform_indices = @transform_1, window_bounds = array<i64: 16, 128>}]} {
    %c0 = arith.constant 0 : index
    %c0_0 = arith.constant 0 : index
    %0 = vector.load %arg1[%c0, %c0_0] : memref<16x128xf32, #tpu.memory_space<vmem>>, vector<16x128xf32>
    %1 = tpu.iota {dimensions = array<i32: 1>} : vector<16x128xi32>
    %c16_i32 = arith.constant 16 : i32
    %c0_i32 = arith.constant 0 : i32
    %2 = arith.cmpi eq, %c16_i32, %c0_i32 : i32
    %c1_i32 = arith.constant 1 : i32
    %3 = arith.select %2, %c1_i32, %c16_i32 : i32
    %4 = vector.broadcast %3 : i32 to vector<16x128xi32>
    %5 = arith.remsi %1, %4 : vector<16x128xi32>
    %c0_i32_1 = arith.constant 0 : i32
    %6 = vector.broadcast %c0_i32_1 : i32 to vector<16x128xi32>
    %7 = arith.cmpi ne, %5, %6 : vector<16x128xi32>
    %c0_i32_2 = arith.constant 0 : i32
    %8 = vector.broadcast %c0_i32_2 : i32 to vector<16x128xi32>
    %9 = arith.cmpi slt, %5, %8 : vector<16x128xi32>
    %c0_i32_3 = arith.constant 0 : i32
    %10 = arith.cmpi slt, %3, %c0_i32_3 : i32
    %11 = vector.broadcast %10 : i1 to vector<16x128xi1>
    %12 = vector.broadcast %11 : vector<16x128xi1> to vector<16x128xi1>
    %13 = arith.xori %9, %12 : vector<16x128xi1>
    %14 = arith.andi %13, %7 : vector<16x128xi1>
    %15 = vector.broadcast %3 : i32 to vector<16x128xi32>
    %16 = arith.addi %5, %15 : vector<16x128xi32>
    %17 = arith.select %14, %16, %5 : vector<16x128xi1>, vector<16x128xi32>
    %c2_i32 = arith.constant 2 : i32
    %c0_i32_4 = arith.constant 0 : i32
    %18 = arith.cmpi eq, %c2_i32, %c0_i32_4 : i32
    %c1_i32_5 = arith.constant 1 : i32
    %19 = arith.select %18, %c1_i32_5, %c2_i32 : i32
    %20 = vector.broadcast %19 : i32 to vector<16x128xi32>
    %21 = arith.remsi %1, %20 : vector<16x128xi32>
    %c0_i32_6 = arith.constant 0 : i32
    %22 = vector.broadcast %c0_i32_6 : i32 to vector<16x128xi32>
    %23 = arith.cmpi ne, %21, %22 : vector<16x128xi32>
    %c0_i32_7 = arith.constant 0 : i32
    %24 = vector.broadcast %c0_i32_7 : i32 to vector<16x128xi32>
    %25 = arith.cmpi slt, %21, %24 : vector<16x128xi32>
    %c0_i32_8 = arith.constant 0 : i32
    %26 = arith.cmpi slt, %19, %c0_i32_8 : i32
    %27 = vector.broadcast %26 : i1 to vector<16x128xi1>
    %28 = vector.broadcast %27 : vector<16x128xi1> to vector<16x128xi1>
    %29 = arith.xori %25, %28 : vector<16x128xi1>
    %30 = arith.andi %29, %23 : vector<16x128xi1>
    %31 = vector.broadcast %19 : i32 to vector<16x128xi32>
    %32 = arith.addi %21, %31 : vector<16x128xi32>
    %33 = arith.select %30, %32, %21 : vector<16x128xi1>, vector<16x128xi32>
    %c0_i32_9 = arith.constant 0 : i32
    %34 = vector.broadcast %c0_i32_9 : i32 to vector<16x128xi32>
    %35 = arith.cmpi eq, %33, %34 : vector<16x128xi32>
    %cst = arith.constant 0.000000e+00 : f32
    %36 = vector.broadcast %cst : f32 to vector<16x128xf32>
    %37 = arith.subf %36, %0 : vector<16x128xf32>
    %38 = arith.select %35, %37, %0 : vector<16x128xi1>, vector<16x128xf32>
    %c8_i32 = arith.constant 8 : i32
    %39 = vector.broadcast %c8_i32 : i32 to vector<16x128xi32>
    %40 = arith.cmpi slt, %17, %39 : vector<16x128xi32>
    %41 = math.sin %38 : vector<16x128xf32>
    %cst_10 = arith.constant 0.000000e+00 : f32
    %42 = vector.broadcast %cst_10 : f32 to vector<16x128xf32>
    %43 = arith.maximumf %38, %42 : vector<16x128xf32>
    %44 = arith.select %40, %41, %43 : vector<16x128xi1>, vector<16x128xf32>
    %c0_11 = arith.constant 0 : index
    %c0_12 = arith.constant 0 : index
    %45 = vector.load %arg2[%c0_11, %c0_12] : memref<16x128xf32, #tpu.memory_space<vmem>>, vector<16x128xf32>
    tpu.vector_store %arg2[%c0_11, %c0_12], %44 {strides = array<i32>} : memref<16x128xf32, #tpu.memory_space<vmem>>, vector<16x128xf32>,
    return
  }
  func.func @transform_0(%arg0: i32) -> (i32, i32) {
    %c0_i32 = arith.constant 0 : i32
    %c0_i32_0 = arith.constant 0 : i32
    return %arg0, %c0_i32 : i32, i32
  }
  func.func @transform_1(%arg0: i32) -> (i32, i32) {
    %c0_i32 = arith.constant 0 : i32
    %c0_i32_0 = arith.constant 0 : i32
    return %arg0, %c0_i32 : i32, i32
  }
}

</mosaic_0001>

<llo_original>
// kernel: hh_sinlu.1
$region0: #{hh_sinlu.1}
  #allocation0 [shape = 'u32[]', space=smem, size = 0x4, offset = 0x4, fixed_abs, tag = 'smem constant byte address 0x4 - core index']
  #allocation1 [shape = 'u32[144,128]{1,0:T(1,128)}', space=vmem, size = 0x12000, scoped, tag = 'internal scratch']
  %s0 = inlined_call_operand.vmem [shape: f32[16,128], index: 0, kind: input, shape index: {}]
  %s1 = inlined_call_operand.vmem [shape: f32[16,128], index: 1, kind: output, shape index: {}]
  %s2 = sld [smem:[#allocation0]]
  $region14: #{hh_sinlu.1} parent=0
    _
  %s4 = ssub.s32 1, %s2
  %s5 = scalar_select 0, %s4, %s2
  // Predicated region
  $region2: #{hh_sinlu.1} parent=0 // pred_check
    _
  $region3: #{hh_sinlu.1} parent=0 // pred_check_branch
    %7 = sbr.rel (0) target = $region5
  $region4: #{hh_sinlu.1} parent=0 // pred_region
    _
  $region5: #{hh_sinlu.1} parent=0 // pred_fallthru
    _
  %v8 = vld [vmem:[%s0] sm:$0xff]
  %v9 = vld [vmem:[%s0 + $0x8] sm:$0xff]
  %v10 = vlaneseq
  %v11 = vand.u32 %v10, 127
  %vm12 = vcmp.lt.s32.totalorder %v11, 0
  %v13 = vsub.s32 0, %v11
  %v14 = vsel %vm12, %v13, %v11
  %v15 = vshrl.u32 %v14, 4
  %v16 = vand.u32 %v14, 15
  %v17 = vsub.s32 0, %v16
  %v18 = vsel %vm12, %v17, %v16
  %vm19 = vcmp.ne.s32.totalorder %v18, 0
  %vm20 = vcmp.lt.s32.totalorder %v18, 0
  %vm21 = vmand %vm20, %vm19
  %v22 = vadd.s32 %v18, 16
  %v23 = vsel %vm21, %v22, %v18
  %vm24 = vcmp.lt.s32.totalorder %v11, 0
  %v25 = vsub.s32 0, %v11
  %v26 = vsel %vm24, %v25, %v11
  %v27 = vshrl.u32 %v26, 1
  %v28 = vand.u32 %v26, 1
  %v29 = vsub.s32 0, %v28
  %v30 = vsel %vm24, %v29, %v28
  %vm31 = vcmp.ne.s32.totalorder %v30, 0
  %vm32 = vcmp.lt.s32.totalorder %v30, 0
  %vm33 = vmand %vm32, %vm31
  %v34 = vadd.s32 %v30, 2
  %v35 = vsel %vm33, %v34, %v30
  %vm36 = vcmp.eq.s32.totalorder %v35, 0
  %v37 = vsub.f32 0.0, %v8
  %v38 = vsub.f32 0.0, %v9
  %v39 = vsel %vm36, %v37, %v8
  %v40 = vsel %vm36, %v38, %v9
  %vm41 = vcmp.lt.s32.totalorder %v23, 8
  %v42 = vand.u32 2147483647, %v39
  %vm43 = vcmp.le.f32.partialorder %v42, 0.7853982
  %vm44 = vcmp.lt.s32.totalorder %v39, 0
  %v45 = vand.u32 %v39, 2139095040
  %v46 = vshrl.u32 %v45, 23
  %v47 = vsub.s32 %v46, 127
  %v48 = vand.u32 2147483647, %v39
  %v49 = vand.u32 %v48, 8388607
  %v50 = vor.u32 %v49, 8388608
  %v51 = vsub.s32 0, %v50
  %v52 = vadd.s32 %v47, 1
  %vm53 = vcmp.gt.s32.totalorder %v52, 0
  %v54 = vsel %vm53, %v52, 0
  %v55 = vshrl.u32 %v54, 5
  %v56 = vand.u32 %v54, 31
  %v57 = vsub.s32 32, %v56
  %v58 = vshrl.u32 683565275, %v57
  %v59 = vshll.u32 683565275, %v56
  %v60 = vshrl.u32 2475754826, %v57
  %v61 = vor.u32 %v59, %v60
  %v62 = vshll.u32 2475754826, %v56
  %v63 = vshrl.u32 2131351028, %v57
  %v64 = vor.u32 %v62, %v63
  %v65 = vshll.u32 2131351028, %v56
  %v66 = vshrl.u32 2102212464, %v57
  %v67 = vor.u32 %v65, %v66
  %v68 = vshll.u32 2102212464, %v56
  %v69 = vshrl.u32 920167782, %v57
  %v70 = vor.u32 %v68, %v69
  %v71 = vshll.u32 920167782, %v56
  %v72 = vshrl.u32 1326507024, %v57
  %v73 = vor.u32 %v71, %v72
  %vm74 = vcmp.lt.s32.totalorder %v55, 1
  %vm75 = vcmp.lt.s32.totalorder %v55, 2
  %vm76 = vcmp.lt.s32.totalorder %v55, 3
  %vm77 = vcmp.lt.s32.totalorder %v55, 4
  %v78 = vsel %vm74, %v58, %v61
  %v79 = vsel %vm77, %v67, 2102212464
  %v80 = vsel %vm76, %v64, %v79
  %v81 = vsel %vm75, %v78, %v80
  %v82 = vsel %vm74, %v61, %v64
  %v83 = vsel %vm77, %v70, 920167782
  %v84 = vsel %vm76, %v67, %v83
  %v85 = vsel %vm75, %v82, %v84
  %v86 = vsel %vm74, %v64, %v67
  %v87 = vsel %vm77, %v73, 1326507024
  %v88 = vsel %vm76, %v70, %v87
  %v89 = vsel %vm75, %v86, %v88
  %v90 = vshll.u32 %v50, 8
  %v91 = vmul.u32.u64.compose %v90, %v89
  %v92 = vextract.low.u32 %v91
  %v93 = vextract.high.u32 %v91
  %v94 = vmul.u32.u64.compose %v90, %v85
  %v95 = vextract.low.u32 %v94
  %v96 = vextract.high.u32 %v94
  %v97 = vmul.u32 %v90, %v81
  %v98 = vadd.s32 %v93, %v95
  %vm99 = vc.u32 %v93, %v95
  %v100 = vadd.s32 %v96, 1
  %v101 = vsel %vm99, %v100, %v96
  %v102 = vadd.s32 %v97, %v101
  %v103 = vadd.s32 %v102, 536870912
  %v104 = vshrl.u32 %v103, 30
  %v105 = vshll.u32 %v104, 30
  %v106 = vsub.s32 %v102, %v105
  %vm107 = vcmp.lt.s32.totalorder %v106, 0
  %v108 = vsub.s32 0, %v106
  %v109 = vsel %vm107, %v108, %v106
  %v110 = vclz %v109
  %v111 = vsub.s32 %v110, 2
  %vm112 = vcmp.gt.s32.totalorder 0, %v111
  %v113 = vsel %vm112, 0, %v111
  %v114 = vsub.s32 32, %v113
  %v115 = vshll.u32 %v106, %v113
  %v116 = vshrl.u32 %v98, %v114
  %v117 = vor.u32 %v115, %v116
  %v118 = vsub.s32 4294967266, %v113
  %v119 = vadd.s32 %v118, 127
  %v120 = vshll.u32 %v119, 23
  %v121 = vor.u32 4788187, %v120
  %v122 = vand.u32 2147483647, %v121
  %v124 = vcvt.s32.f32 %v117
  %v125 = vmul.f32 %v124, %v122
  %v126 = vxor.u32 %v125, 2147483648
  %v127 = vsel %vm44, %v126, %v125
  %v128 = vsub.s32 4, %v104
  %v129 = vsel %vm44, %v128, %v104
  %v130 = vsel %vm43, %v39, %v127
  %v131 = vsel %vm43, 0, %v129
  %v132 = vcosq.f32.pop %v130
  %v133 = vsinq.f32.pop %v130
  %vm134 = vweird.f32 %v39
  %v135 = vadd.s32 %v131, 3
  %v136 = vand.u32 %v135, 3
  %vm137 = vcmp.lt.s32.totalorder %v136, 2
  %vm138 = vcmp.eq.s32.totalorder %v136, 0
  %v139 = vxor.u32 %v133, 2147483648
  %v140 = vsel %vm138, %v132, %v139
  %vm141 = vcmp.eq.s32.totalorder %v136, 2
  %v142 = vxor.u32 %v132, 2147483648
  %v143 = vsel %vm141, %v142, %v133
  %v144 = vsel %vm137, %v140, %v143
  %v145 = vsel %vm134, nan, %v144
  %v146 = vand.u32 2147483647, %v40
  %vm147 = vcmp.le.f32.partialorder %v146, 0.7853982
  %vm148 = vcmp.lt.s32.totalorder %v40, 0
  %v149 = vand.u32 %v40, 2139095040
  %v150 = vshrl.u32 %v149, 23
  %v151 = vsub.s32 %v150, 127
  %v152 = vand.u32 2147483647, %v40
  %v153 = vand.u32 %v152, 8388607
  %v154 = vor.u32 %v153, 8388608
  %v155 = vsub.s32 0, %v154
  %v156 = vadd.s32 %v151, 1
  %vm157 = vcmp.gt.s32.totalorder %v156, 0
  %v158 = vsel %vm157, %v156, 0
  %v159 = vshrl.u32 %v158, 5
  %v160 = vand.u32 %v158, 31
  %v161 = vsub.s32 32, %v160
  %v162 = vshrl.u32 683565275, %v161
  %v163 = vshll.u32 683565275, %v160
  %v164 = vshrl.u32 2475754826, %v161
  %v165 = vor.u32 %v163, %v164
  %v166 = vshll.u32 2475754826, %v160
  %v167 = vshrl.u32 2131351028, %v161
  %v168 = vor.u32 %v166, %v167
  %v169 = vshll.u32 2131351028, %v160
  %v170 = vshrl.u32 2102212464, %v161
  %v171 = vor.u32 %v169, %v170
  %v172 = vshll.u32 2102212464, %v160
  %v173 = vshrl.u32 920167782, %v161
  %v174 = vor.u32 %v172, %v173
  %v175 = vshll.u32 920167782, %v160
  %v176 = vshrl.u32 1326507024, %v161
  %v177 = vor.u32 %v175, %v176
  %vm178 = vcmp.lt.s32.totalorder %v159, 1
  %vm179 = vcmp.lt.s32.totalorder %v159, 2
  %vm180 = vcmp.lt.s32.totalorder %v159, 3
  %vm181 = vcmp.lt.s32.totalorder %v159, 4
  %v182 = vsel %vm178, %v162, %v165
  %v183 = vsel %vm181, %v171, 2102212464
  %v184 = vsel %vm180, %v168, %v183
  %v185 = vsel %vm179, %v182, %v184
  %v186 = vsel %vm178, %v165, %v168
  %v187 = vsel %vm181, %v174, 920167782
  %v188 = vsel %vm180, %v171, %v187
  %v189 = vsel %vm179, %v186, %v188
  %v190 = vsel %vm178, %v168, %v171
  %v191 = vsel %vm181, %v177, 1326507024
  %v192 = vsel %vm180, %v174, %v191
  %v193 = vsel %vm179, %v190, %v192
  %v194 = vshll.u32 %v154, 8
  %v195 = vmul.u32.u64.compose %v194, %v193
  %v196 = vextract.low.u32 %v195
  %v197 = vextract.high.u32 %v195
  %v198 = vmul.u32.u64.compose %v194, %v189
  %v199 = vextract.low.u32 %v198
  %v200 = vextract.high.u32 %v198
  %v201 = vmul.u32 %v194, %v185
  %v202 = vadd.s32 %v197, %v199
  %vm203 = vc.u32 %v197, %v199
  %v204 = vadd.s32 %v200, 1
  %v205 = vsel %vm203, %v204, %v200
  %v206 = vadd.s32 %v201, %v205
  %v207 = vadd.s32 %v206, 536870912
  %v208 = vshrl.u32 %v207, 30
  %v209 = vshll.u32 %v208, 30
  %v210 = vsub.s32 %v206, %v209
  %vm211 = vcmp.lt.s32.totalorder %v210, 0
  %v212 = vsub.s32 0, %v210
  %v213 = vsel %vm211, %v212, %v210
  %v214 = vclz %v213
  %v215 = vsub.s32 %v214, 2
  %vm216 = vcmp.gt.s32.totalorder 0, %v215
  %v217 = vsel %vm216, 0, %v215
  %v218 = vsub.s32 32, %v217
  %v219 = vshll.u32 %v210, %v217
  %v220 = vshrl.u32 %v202, %v218
  %v221 = vor.u32 %v219, %v220
  %v222 = vsub.s32 4294967266, %v217
  %v223 = vadd.s32 %v222, 127
  %v224 = vshll.u32 %v223, 23
  %v225 = vor.u32 4788187, %v224
  %v226 = vand.u32 2147483647, %v225
  %v228 = vcvt.s32.f32 %v221
  %v229 = vmul.f32 %v228, %v226
  %v230 = vxor.u32 %v229, 2147483648
  %v231 = vsel %vm148, %v230, %v229
  %v232 = vsub.s32 4, %v208
  %v233 = vsel %vm148, %v232, %v208
  %v234 = vsel %vm147, %v40, %v231
  %v235 = vsel %vm147, 0, %v233
  %v236 = vcosq.f32.pop %v234
  %v237 = vsinq.f32.pop %v234
  %vm238 = vweird.f32 %v40
  %v239 = vadd.s32 %v235, 3
  %v240 = vand.u32 %v239, 3
  %vm241 = vcmp.lt.s32.totalorder %v240, 2
  %vm242 = vcmp.eq.s32.totalorder %v240, 0
  %v243 = vxor.u32 %v237, 2147483648
  %v244 = vsel %vm242, %v236, %v243
  %vm245 = vcmp.eq.s32.totalorder %v240, 2
  %v246 = vxor.u32 %v236, 2147483648
  %v247 = vsel %vm245, %v246, %v237
  %v248 = vsel %vm241, %v244, %v247
  %v249 = vsel %vm238, nan, %v248
  %v250 = vmax.f32 %v39, 0.0
  %v251 = vmax.f32 %v40, 0.0
  %v252 = vsel %vm41, %v145, %v250
  %v253 = vsel %vm41, %v249, %v251
  %254 = vst [vmem:[%s1] sm:$0xff] %v252
  %255 = vst [vmem:[%s1 + $0x8] sm:$0xff] %v253
  // Predicated region
  $region6: #{hh_sinlu.1} parent=0 // pred_check
    _
  $region7: #{hh_sinlu.1} parent=0 // pred_check_branch
    %257 = sbr.rel (0) target = $region9
  $region8: #{hh_sinlu.1} parent=0 // pred_region
    _
  $region9: #{hh_sinlu.1} parent=0 // pred_fallthru
    _
  // Predicated region
  $region10: #{hh_sinlu.1} parent=0 // pred_check
    _
  $region11: #{hh_sinlu.1} parent=0 // pred_check_branch
    %259 = sbr.rel (0) target = $region13
  $region12: #{hh_sinlu.1} parent=0 // pred_region
    _
  $region13: #{hh_sinlu.1} parent=0 // pred_fallthru
    _

</llo_original>
